<compile_context>
chip_gen: v7x
topology: tpu7x:2x2x1
jax: 0.10.0
libtpu: 0.0.40
codegen_flags: <defaults>
</compile_context>

<pallas_src>
import jax
import jax.numpy as jnp
from jax import lax
from jax.experimental import pallas as pl
from jax.experimental.pallas import tpu as pltpu


def mlp_kernel(x_ref, w1_ref, b1_ref, w2_ref, b2_ref, o_ref):
    # x: (B, D_in), w1: (H, D_in) [PyTorch layout], b1: (1, H),
    # w2: (D_out, H), b2: (D_out, 1), o: (D_out, B)  (batch on lanes).
    x = x_ref[...]
    w1 = w1_ref[...]
    w2 = w2_ref[...]

    # First linear + ReLU: contract D_in of x with D_in of w1  -> (B, H).
    # (out, in) weight is consumed as-is; no transpose materialized.
    h = lax.dot_general(
        x, w1,
        dimension_numbers=(((1,), (1,)), ((), ())),
        preferred_element_type=jnp.float32,
    )
    h = jnp.maximum(h + b1_ref[...], 0.0)          # (B, H) + (1, H), ReLU on VPU

    # Second linear + Sigmoid, emitted transposed so batch lands on lanes:
    # contract H of w2 with H of h  -> (D_out, B).
    z = lax.dot_general(
        w2, h,
        dimension_numbers=(((1,), (1,)), ((), ())),
        preferred_element_type=jnp.float32,
    )
    z = z + b2_ref[...]                            # (D_out, B) + (D_out, 1)
    o_ref[...] = jax.nn.sigmoid(z).astype(o_ref.dtype)


def classifier_forward_t(x, w1, b1, w2, b2):
    """Fast path: returns (D_out, B) (batch on lanes, lane-dense stores).

    x: (B, D_in); w1: (H, D_in); b1: (H,); w2: (D_out, H); b2: (D_out,).
    Weights are passed in PyTorch (out, in) layout untouched.
    """
    B, D_in = x.shape
    H = w1.shape[0]
    D_out = w2.shape[0]

    vmem_specs = [pl.BlockSpec(memory_space=pltpu.MemorySpace.VMEM) for _ in range(5)]

    return pl.pallas_call(
        mlp_kernel,
        out_shape=jax.ShapeDtypeStruct((D_out, B), jnp.float32),
        in_specs=vmem_specs,
        out_specs=pl.BlockSpec(memory_space=pltpu.MemorySpace.VMEM),
    )(x, w1, b1.reshape(1, H), w2, b2.reshape(D_out, 1))


def classifier_forward(x, w1, b1, w2, b2):
    """Drop-in module semantics: returns (B, D_out) like the PyTorch forward."""
    # Tiny (D_out, B) transpose; at scale, consume classifier_forward_t directly.
    return classifier_forward_t(x, w1, b1, w2, b2).T


def reference_forward(x, w1, b1, w2, b2):
    h = jnp.maximum(x @ w1.T + b1, 0.0)
    return jax.nn.sigmoid(h @ w2.T + b2)


if __name__ == "__main__":
    # Small shapes consistent with the module:
    # Linear(input_dim, hidden_dim) -> ReLU -> Linear(hidden_dim, output_dim) -> Sigmoid
    batch, input_dim, hidden_dim, output_dim = 8, 16, 32, 4

    key = jax.random.PRNGKey(0)
    kx, kw1, kb1, kw2, kb2 = jax.random.split(key, 5)

    x = jax.random.normal(kx, (batch, input_dim), dtype=jnp.float32)

    # Deterministic init mimicking torch.nn.Linear's uniform(-1/sqrt(fan_in), 1/sqrt(fan_in))
    lim1 = 1.0 / (input_dim ** 0.5)
    lim2 = 1.0 / (hidden_dim ** 0.5)
    w1 = jax.random.uniform(kw1, (hidden_dim, input_dim), jnp.float32, -lim1, lim1)
    b1 = jax.random.uniform(kb1, (hidden_dim,), jnp.float32, -lim1, lim1)
    w2 = jax.random.uniform(kw2, (output_dim, hidden_dim), jnp.float32, -lim2, lim2)
    b2 = jax.random.uniform(kb2, (output_dim,), jnp.float32, -lim2, lim2)

    y = classifier_forward(x, w1, b1, w2, b2)
    jax.block_until_ready(y)

    y_ref = reference_forward(x, w1, b1, w2, b2)
    assert y.shape == (batch, output_dim)
    assert jnp.allclose(y, y_ref, atol=1e-5, rtol=1e-5), "mismatch vs reference"

    print("KERNEL_OK")
</pallas_src>

<mosaic_0001>
module attributes {stable_mosaic.version = 11 : i64} {
  func.func @mlp_kernel(%arg0: memref<8x16xf32, #tpu.memory_space<vmem>>, %arg1: memref<32x16xf32, #tpu.memory_space<vmem>>, %arg2: memref<1x32xf32, #tpu.memory_space<vmem>>, %arg3: memref<4x32xf32, #tpu.memory_space<vmem>>, %arg4: memref<4x1xf32, #tpu.memory_space<vmem>>, %arg5: memref<4x8xf32, #tpu.memory_space<vmem>>) attributes {dimension_semantics = [], scalar_prefetch = 0 : i64, scratch_operands = 0 : i64, tpu.core_type = #tpu.core_type<tc>} {
    %c0 = arith.constant 0 : index
    %c0_0 = arith.constant 0 : index
    %0 = vector.load %arg0[%c0, %c0_0] : memref<8x16xf32, #tpu.memory_space<vmem>>, vector<8x16xf32>
    %c0_1 = arith.constant 0 : index
    %c0_2 = arith.constant 0 : index
    %1 = vector.load %arg1[%c0_1, %c0_2] : memref<32x16xf32, #tpu.memory_space<vmem>>, vector<32x16xf32>
    %c0_3 = arith.constant 0 : index
    %c0_4 = arith.constant 0 : index
    %2 = vector.load %arg3[%c0_3, %c0_4] : memref<4x32xf32, #tpu.memory_space<vmem>>, vector<4x32xf32>
    %cst = arith.constant dense<0.000000e+00> : vector<8x32xf32>
    %3 = tpu.matmul %0, %1, %cst {dimension_numbers = #tpu.dot_dimension_numbers<[1], [1], [0], [0], [0, 0, 1, 0], [], []>} : vector<8x16xf32>, vector<32x16xf32>, vector<8x32xf32> -> vector<8x32xf32>
    %c0_5 = arith.constant 0 : index
    %c0_6 = arith.constant 0 : index
    %4 = vector.load %arg2[%c0_5, %c0_6] : memref<1x32xf32, #tpu.memory_space<vmem>>, vector<1x32xf32>
    %5 = vector.broadcast %4 : vector<1x32xf32> to vector<8x32xf32>
    %6 = arith.addf %3, %5 : vector<8x32xf32>
    %cst_7 = arith.constant 0.000000e+00 : f32
    %7 = vector.broadcast %cst_7 : f32 to vector<8x32xf32>
    %8 = arith.maximumf %6, %7 : vector<8x32xf32>
    %cst_8 = arith.constant dense<0.000000e+00> : vector<4x8xf32>
    %9 = tpu.matmul %2, %8, %cst_8 {dimension_numbers = #tpu.dot_dimension_numbers<[1], [1], [0], [0], [0, 0, 1, 0], [], []>} : vector<4x32xf32>, vector<8x32xf32>, vector<4x8xf32> -> vector<4x8xf32>
    %c0_9 = arith.constant 0 : index
    %c0_10 = arith.constant 0 : index
    %10 = vector.load %arg4[%c0_9, %c0_10] : memref<4x1xf32, #tpu.memory_space<vmem>>, vector<4x1xf32>
    %11 = vector.broadcast %10 : vector<4x1xf32> to vector<4x8xf32>
    %12 = arith.addf %9, %11 : vector<4x8xf32>
    %13 = arith.negf %12 : vector<4x8xf32>
    %14 = math.exp %13 : vector<4x8xf32>
    %cst_11 = arith.constant 1.000000e+00 : f32
    %15 = vector.broadcast %cst_11 : f32 to vector<4x8xf32>
    %16 = arith.addf %15, %14 : vector<4x8xf32>
    %17 = arith.divf %15, %16 : vector<4x8xf32>
    %c0_12 = arith.constant 0 : index
    %c0_13 = arith.constant 0 : index
    %18 = vector.load %arg5[%c0_12, %c0_13] : memref<4x8xf32, #tpu.memory_space<vmem>>, vector<4x8xf32>
    tpu.vector_store %arg5[%c0_12, %c0_13], %17 {strides = array<i32>} : memref<4x8xf32, #tpu.memory_space<vmem>>, vector<4x8xf32>,
    return
  }
}

</mosaic_0001>

<llo_original>
// kernel: tpu_custom_call.1
$region0: #{tpu_custom_call.1}
  #allocation0 [shape = 'u32[]', space=smem, size = 0x4, offset = 0x4, fixed_abs, tag = 'smem constant byte address 0x4 - core index']
  #allocation1 [shape = 'u32[144,128]{1,0:T(1,128)}', space=vmem, size = 0x12000, scoped, tag = 'internal scratch']
  %s0 = inlined_call_operand.vmem [shape: f32[8,16], index: 0, kind: input, shape index: {}]
  %s1 = inlined_call_operand.vmem [shape: f32[32,16], index: 1, kind: input, shape index: {}]
  %s2 = inlined_call_operand.vmem [shape: f32[1,32], index: 2, kind: input, shape index: {}]
  %s3 = inlined_call_operand.vmem [shape: f32[4,32], index: 3, kind: input, shape index: {}]
  %s4 = inlined_call_operand.vmem [shape: f32[4,1], index: 4, kind: input, shape index: {}]
  %s5 = inlined_call_operand.hbm [shape: f32[4,8], index: 5, kind: output, shape index: {}]
  %s6 = sld [smem:[#allocation0]]
  $region30: #{tpu_custom_call.1} parent=0
    _
  %s8 = ssub.s32 1, %s6
  %s9 = scalar_select 0, %s8, %s6
  $region1: #{tpu_custom_call.1} parent=0
    #allocation2 [shape = 'u8[2048]{0}', space=vmem, size = 0x800, scoped, tag = 'output window, operand 0, single buffered']
    #allocation3 [shape = 's32[1]{0}', space=sflag, size = 0x4, scoped, tag = 'scoped memory for tpu_custom_call.1']
    %10 = vsyncpa [#allocation3], 0
    // Predicated region
    $region2: #{tpu_custom_call.1} parent=1 // pred_check
      _
    $region3: #{tpu_custom_call.1} parent=1 // pred_check_branch
      %12 = sbr.rel (0) target = $region5
    $region4: #{tpu_custom_call.1} parent=1 // pred_region
      _
    $region5: #{tpu_custom_call.1} parent=1 // pred_fallthru
      _
    // Predicated region
    $region6: #{tpu_custom_call.1} parent=1 // pred_check
      _
    $region7: #{tpu_custom_call.1} parent=1 // pred_check_branch
      %14 = sbr.rel (0) target = $region9
    $region8: #{tpu_custom_call.1} parent=1 // pred_region
      _
    $region9: #{tpu_custom_call.1} parent=1 // pred_fallthru
      _
    // Predicated region
    $region10: #{tpu_custom_call.1} parent=1 // pred_check
      _
    $region11: #{tpu_custom_call.1} parent=1 // pred_check_branch
      %16 = sbr.rel (0) target = $region13
    $region12: #{tpu_custom_call.1} parent=1 // pred_region
      _
    $region13: #{tpu_custom_call.1} parent=1 // pred_fallthru
      _
    // Predicated region
    $region14: #{tpu_custom_call.1} parent=1 // pred_check
      _
    $region15: #{tpu_custom_call.1} parent=1 // pred_check_branch
      %18 = sbr.rel (0) target = $region17
    $region16: #{tpu_custom_call.1} parent=1 // pred_region
      _
    $region17: #{tpu_custom_call.1} parent=1 // pred_fallthru
      _
    // Predicated region
    $region18: #{tpu_custom_call.1} parent=1 // pred_check
      _
    $region19: #{tpu_custom_call.1} parent=1 // pred_check_branch
      %20 = sbr.rel (0) target = $region21
    $region20: #{tpu_custom_call.1} parent=1 // pred_region
      _
    $region21: #{tpu_custom_call.1} parent=1 // pred_fallthru
      _
    %v21 = vld [vmem:[%s0] sm:$0xff]
    %v22 = vld [vmem:[%s1] sm:$0xff]
    %v23 = vld [vmem:[%s1 + $0x8] sm:$0xff]
    %v24 = vld [vmem:[%s1 + $0x10] sm:$0xff]
    %v25 = vld [vmem:[%s1 + $0x18] sm:$0xff]
    %v26 = vld [vmem:[%s3] sm:$0xf]
    %v27 = vld [vmem:[%s2] sm:$0x1]
    %v29 = vlaneseq
    %v30 = vshrl.u32 %v29, 7
    %v31 = vsub.s32 0, %v30
    %v32 = vrot.slane %v27, %v31
    %vm34 = vcmask 130048
    %v36 = vsel %vm34, %v21, 0
    %v39 = vsel %vm34, %v22, 0
    %v42 = vsel %vm34, %v23, 0
    %v45 = vsel %vm34, %v24, 0
    %v48 = vsel %vm34, %v25, 0
    %50 = vmatprep.subr.mxu0 0.0
    %51 = vmatpush1.xpose.msra.mxu0 %v39
    %52 = vmatprep.subr.mxu0 0.0
    %53 = vmatpush1.xpose.msra.mxu0 %v42
    %54 = vmatprep.subr.mxu0 0.0
    %55 = vmatpush1.xpose.msra.mxu0 %v45
    %56 = vmatprep.subr.mxu0 0.0
    %57 = vmatpush1.xpose.msra.mxu0 %v48
    %58 = vmatprep.subr.mxu0 0.0
    %59 = vmatpush1.xpose.msra.mxu0 0.0
    %60 = vmatprep.subr.mxu0 0.0
    %61 = vmatpush1.xpose.msra.mxu0 0.0
    %62 = vmatprep.subr.mxu0 0.0
    %63 = vmatpush1.xpose.msra.mxu0 0.0
    %64 = vmatprep.subr.mxu0 0.0
    %65 = vmatpush1.xpose.msra.mxu0 0.0
    %66 = vmatprep.subr.mxu0 0.0
    %67 = vmatpush1.xpose.msra.mxu0 0.0
    %68 = vmatprep.subr.mxu0 0.0
    %69 = vmatpush1.xpose.msra.mxu0 0.0
    %70 = vmatprep.subr.mxu0 0.0
    %71 = vmatpush1.xpose.msra.mxu0 0.0
    %72 = vmatprep.subr.mxu0 0.0
    %73 = vmatpush1.xpose.msra.mxu0 0.0
    %74 = vmatprep.subr.mxu0 0.0
    %75 = vmatpush1.xpose.msra.mxu0 0.0
    %76 = vmatprep.subr.mxu0 0.0
    %77 = vmatpush1.xpose.msra.mxu0 0.0
    %78 = vmatprep.subr.mxu0 0.0
    %79 = vmatpush1.xpose.msra.mxu0 0.0
    %80 = vmatprep.subr.mxu0 0.0
    %81 = vmatpush1.xpose.msra.mxu0 0.0
    %82 = vmatprep.subr.mxu0 0.0
    %83 = vmatpush1.xpose.msra.mxu0 0.0
    %84 = vmatprep.subr.mxu0 0.0
    %85 = vmatpush1.xpose.msra.mxu0 0.0
    %86 = vmatprep.subr.mxu0 0.0
    %87 = vmatpush1.xpose.msra.mxu0 0.0
    %88 = vmatprep.subr.mxu0 0.0
    %89 = vmatpush1.xpose.msra.mxu0 0.0
    %90 = vmatprep.subr.mxu0 0.0
    %91 = vmatpush1.xpose.msra.mxu0 0.0
    %92 = vmatprep.subr.mxu0 0.0
    %93 = vmatpush1.xpose.msra.mxu0 0.0
    %94 = vmatprep.subr.mxu0 0.0
    %95 = vmatpush1.xpose.msra.mxu0 0.0
    %96 = vmatprep.subr.mxu0 0.0
    %97 = vmatpush1.xpose.msra.mxu0 0.0
    %98 = vmatprep.subr.mxu0 0.0
    %99 = vmatpush1.xpose.msra.mxu0 0.0
    %100 = vmatprep.subr.mxu0 0.0
    %101 = vmatpush1.xpose.msra.mxu0 0.0
    %102 = vmatprep.subr.mxu0 0.0
    %103 = vmatpush1.xpose.msra.mxu0 0.0
    %104 = vmatprep.subr.mxu0 0.0
    %105 = vmatpush1.xpose.msra.mxu0 0.0
    %106 = vmatprep.subr.mxu0 0.0
    %107 = vmatpush1.xpose.msra.mxu0 0.0
    %108 = vmatprep.subr.mxu0 0.0
    %109 = vmatpush1.xpose.msra.mxu0 0.0
    %110 = vmatprep.subr.mxu0 0.0
    %111 = vmatpush1.xpose.msra.mxu0 0.0
    %112 = vmatprep.subr.mxu0 0.0
    %113 = vmatpush1.xpose.msra.mxu0 0.0
    %114 = vmatprep.mubr.f32.mxu0 0.0
    %115 = vmatmul.mubr.f32.gmra.mrb[0].mxu0 %v36
    %v116 = vpop.f32.mrb[0].mxu0
    %v117 = vadd.f32 %v32, %v116
    %v118 = vpop.f32.mrb[0].mxu0
    %119 = vdwg.mxu0
    %v120 = vmax.f32 %v117, 0.0
    %v121 = vld [vmem:[%s4] sm:$0xf]
    %123 = vset.pattern.permute.xlu0 0
    %124 = vperm.xlu0 %123, %v121
    %v125 = vpop.permute.xlu0 %124
    %vm127 = vcmask 261120
    %v129 = vsel %vm127, %v26, 0
    %v132 = vsel %vm127, %v120, 0
    %134 = vmatprep.subr.mxu0 0.0
    %135 = vmatpush1.xpose.msra.mxu0 %v132
    %136 = vmatprep.subr.mxu0 0.0
    %137 = vmatpush1.xpose.msra.mxu0 0.0
    %138 = vmatprep.subr.mxu0 0.0
    %139 = vmatpush1.xpose.msra.mxu0 0.0
    %140 = vmatprep.subr.mxu0 0.0
    %141 = vmatpush1.xpose.msra.mxu0 0.0
    %142 = vmatprep.subr.mxu0 0.0
    %143 = vmatpush1.xpose.msra.mxu0 0.0
    %144 = vmatprep.subr.mxu0 0.0
    %145 = vmatpush1.xpose.msra.mxu0 0.0
    %146 = vmatprep.subr.mxu0 0.0
    %147 = vmatpush1.xpose.msra.mxu0 0.0
    %148 = vmatprep.subr.mxu0 0.0
    %149 = vmatpush1.xpose.msra.mxu0 0.0
    %150 = vmatprep.subr.mxu0 0.0
    %151 = vmatpush1.xpose.msra.mxu0 0.0
    %152 = vmatprep.subr.mxu0 0.0
    %153 = vmatpush1.xpose.msra.mxu0 0.0
    %154 = vmatprep.subr.mxu0 0.0
    %155 = vmatpush1.xpose.msra.mxu0 0.0
    %156 = vmatprep.subr.mxu0 0.0
    %157 = vmatpush1.xpose.msra.mxu0 0.0
    %158 = vmatprep.subr.mxu0 0.0
    %159 = vmatpush1.xpose.msra.mxu0 0.0
    %160 = vmatprep.subr.mxu0 0.0
    %161 = vmatpush1.xpose.msra.mxu0 0.0
    %162 = vmatprep.subr.mxu0 0.0
    %163 = vmatpush1.xpose.msra.mxu0 0.0
    %164 = vmatprep.subr.mxu0 0.0
    %165 = vmatpush1.xpose.msra.mxu0 0.0
    %166 = vmatprep.subr.mxu0 0.0
    %167 = vmatpush1.xpose.msra.mxu0 0.0
    %168 = vmatprep.subr.mxu0 0.0
    %169 = vmatpush1.xpose.msra.mxu0 0.0
    %170 = vmatprep.subr.mxu0 0.0
    %171 = vmatpush1.xpose.msra.mxu0 0.0
    %172 = vmatprep.subr.mxu0 0.0
    %173 = vmatpush1.xpose.msra.mxu0 0.0
    %174 = vmatprep.subr.mxu0 0.0
    %175 = vmatpush1.xpose.msra.mxu0 0.0
    %176 = vmatprep.subr.mxu0 0.0
    %177 = vmatpush1.xpose.msra.mxu0 0.0
    %178 = vmatprep.subr.mxu0 0.0
    %179 = vmatpush1.xpose.msra.mxu0 0.0
    %180 = vmatprep.subr.mxu0 0.0
    %181 = vmatpush1.xpose.msra.mxu0 0.0
    %182 = vmatprep.subr.mxu0 0.0
    %183 = vmatpush1.xpose.msra.mxu0 0.0
    %184 = vmatprep.subr.mxu0 0.0
    %185 = vmatpush1.xpose.msra.mxu0 0.0
    %186 = vmatprep.subr.mxu0 0.0
    %187 = vmatpush1.xpose.msra.mxu0 0.0
    %188 = vmatprep.subr.mxu0 0.0
    %189 = vmatpush1.xpose.msra.mxu0 0.0
    %190 = vmatprep.subr.mxu0 0.0
    %191 = vmatpush1.xpose.msra.mxu0 0.0
    %192 = vmatprep.subr.mxu0 0.0
    %193 = vmatpush1.xpose.msra.mxu0 0.0
    %194 = vmatprep.subr.mxu0 0.0
    %195 = vmatpush1.xpose.msra.mxu0 0.0
    %196 = vmatprep.subr.mxu0 0.0
    %197 = vmatpush1.xpose.msra.mxu0 0.0
    %198 = vmatprep.mubr.f32.mxu0 0.0
    %199 = vmatmul.mubr.f32.gmra.mrb[0].mxu0 %v129
    %v200 = vpop.f32.mrb[0].mxu0
    %v201 = vadd.f32 %v125, %v200
    %v202 = vpop.f32.mrb[0].mxu0
    %203 = vdwg.mxu0
    %v204 = vxor.u32 %v201, 2147483648
    %v205 = vmul.f32 %v204, 1.442695
    %v206 = vpow.pop %v205
    %v207 = vadd.f32 %v206, 1.0
    %v208 = vrcp.pop %v207
    %v209 = vmul.f32 1.0, %v208
    %vm210 = vcmask 60416
    %211 = vst.msk [vmem:[#allocation2] sm:$0xf] %vm210, %v209
    // Predicated region
    $region22: #{tpu_custom_call.1} parent=1 // pred_check
      _
    $region23: #{tpu_custom_call.1} parent=1 // pred_check_branch
      %213 = sbr.rel (0) target = $region25
    $region24: #{tpu_custom_call.1} parent=1 // pred_region
      %s215 = ssub.s32 64, 64
      %216 = vsyncadd [#allocation3], %s215
      %s218 = sshll.u32 [#allocation2], 4
      %s219 = int_to_ptr.vmem [resolvable:$true] %s218
      %221 = dma.vmem_to_hbm [thread:$0]  %s219, 64, %s5, [#allocation3]
    $region25: #{tpu_custom_call.1} parent=1 // pred_fallthru
      _
    // Predicated region
    $region26: #{tpu_custom_call.1} parent=1 // pred_check
      _
    $region27: #{tpu_custom_call.1} parent=1 // pred_check_branch
      %223 = sbr.rel (0) target = $region29
    $region28: #{tpu_custom_call.1} parent=1 // pred_region
      %224 = dma.done [#allocation3], 64
    $region29: #{tpu_custom_call.1} parent=1 // pred_fallthru
      _
    %225 = vsyncpa [#allocation3], 1

</llo_original>
